<compile_context>
chip_gen: v7x
topology: tpu7x:2x2x1
jax: 0.10.0
libtpu: 0.0.40
codegen_flags: <defaults>
</compile_context>

<pallas_src>
import jax
import jax.numpy as jnp
from jax import lax
from jax.experimental import pallas as pl
from jax.experimental.pallas import tpu as pltpu


# ---------------------------------------------------------------------------
# One-time parameter preprocessing (hoisted out of the hot path).
# ---------------------------------------------------------------------------
def prepare_params(w, b, d_in):
    """w: [H, D_in+H] (PyTorch nn.Linear layout), b: [H].

    Returns lane-padded, pre-transposed params:
        wx_p: [D_in, H_pad], wh_p: [H_pad, H_pad], b_p: [1, H_pad]
    with H_pad = ceil(H / 128) * 128, zero padding everywhere so that the
    padded hidden columns stay exactly 0 through the recurrence
    (tanh(0 + 0 + 0) == 0).
    """
    H = w.shape[0]
    H_pad = ((H + 127) // 128) * 128
    w_t = jnp.transpose(w)            # [D_in + H, H]
    wx = w_t[:d_in, :]                # [D_in, H]
    wh = w_t[d_in:, :]                # [H, H]
    wx_p = jnp.zeros((d_in, H_pad), w.dtype).at[:, :H].set(wx)
    wh_p = jnp.zeros((H_pad, H_pad), w.dtype).at[:H, :H].set(wh)
    b_p = jnp.zeros((1, H_pad), b.dtype).at[:, :H].set(b)
    return wx_p, wh_p, b_p


# ---------------------------------------------------------------------------
# Single-step kernel (exactly RNNLayer.forward, tanh activation).
# No wrapper-side concatenate: x and h enter as separate refs, two matmuls.
# ---------------------------------------------------------------------------
def rnn_step_kernel(x_ref, h_ref, wx_ref, wh_ref, b_ref, out_ref):
    H = h_ref.shape[-1]  # unpadded hidden width (static)
    acc = jnp.dot(x_ref[...], wx_ref[...], preferred_element_type=jnp.float32)
    acc = acc + jnp.dot(h_ref[...], wh_ref[:H, :],
                        preferred_element_type=jnp.float32)
    out_ref[...] = jnp.tanh(acc + b_ref[...]).astype(out_ref.dtype)


def rnn_layer_forward(x, prev_hidden, wx_p, wh_p, b_p):
    """x: [B, D_in], prev_hidden: [B, H] -> new hidden [B, H]."""
    B, d_in = x.shape
    H = prev_hidden.shape[1]
    H_pad = wh_p.shape[0]

    out = pl.pallas_call(
        rnn_step_kernel,
        out_shape=jax.ShapeDtypeStruct((B, H_pad), x.dtype),
        in_specs=[
            pl.BlockSpec((B, d_in), lambda: (0, 0)),
            pl.BlockSpec((B, H), lambda: (0, 0)),
            pl.BlockSpec((d_in, H_pad), lambda: (0, 0)),
            pl.BlockSpec((H_pad, H_pad), lambda: (0, 0)),
            pl.BlockSpec((1, H_pad), lambda: (0, 0)),
        ],
        out_specs=pl.BlockSpec((B, H_pad), lambda: (0, 0)),
    )(x, prev_hidden, wx_p, wh_p, b_p)
    return out[:, :H]


# ---------------------------------------------------------------------------
# Fused-sequence kernel: whole recurrence (per T-chunk) inside one grid step.
# ---------------------------------------------------------------------------
def rnn_seq_kernel(x_ref, h0_ref, wx_ref, wh_ref, b_ref, out_ref, h_carry_ref):
    """x_ref: [T_chunk, B, D_in], h0_ref: [B, H_pad], wx_ref: [D_in, H_pad],
    wh_ref: [H_pad, H_pad], b_ref: [1, H_pad], out_ref: [T_chunk, B, H_pad],
    h_carry_ref: VMEM [B, H_pad] scratch carrying hidden across chunks.

    The hidden state lives in registers inside the unrolled loop; VMEM is
    touched only for x loads, out stores, and the once-per-chunk carry.
    """
    c = pl.program_id(0)
    t_chunk, B, _ = x_ref.shape
    H_pad = out_ref.shape[-1]

    @pl.when(c == 0)
    def _():
        h_carry_ref[...] = h0_ref[...].astype(h_carry_ref.dtype)

    # Hoist weight / bias loads (and the bias broadcast) out of the loop.
    wx = wx_ref[...]
    wh = wh_ref[...]
    bb = jnp.broadcast_to(b_ref[...], (B, H_pad))

    def step(t, h):
        acc = jnp.dot(x_ref[t], wx, preferred_element_type=jnp.float32)
        acc = acc + jnp.dot(h, wh, preferred_element_type=jnp.float32)
        h_new = jnp.tanh(acc + bb)
        out_ref[t] = h_new.astype(out_ref.dtype)
        return h_new

    unroll = t_chunk if t_chunk <= 32 else 8
    h_final = lax.fori_loop(0, t_chunk, step, h_carry_ref[...].astype(jnp.float32),
                            unroll=unroll)
    h_carry_ref[...] = h_final


def rnn_sequence_forward(x_seq, h0, wx_p, wh_p, b_p, *, t_chunk=None):
    """x_seq: [T, B, D_in], h0: [B, H] -> all hidden states [T, B, H]."""
    T, B, d_in = x_seq.shape
    H = h0.shape[1]
    H_pad = wh_p.shape[0]

    if t_chunk is None:
        t_chunk = T if T <= 128 else 128
    assert T % t_chunk == 0, "T must be a multiple of t_chunk"
    num_chunks = T // t_chunk

    # Zero-pad the initial hidden to lane width once (stays 0 in padded cols).
    h0_p = jnp.zeros((B, H_pad), h0.dtype).at[:, :H].set(h0)

    out = pl.pallas_call(
        rnn_seq_kernel,
        out_shape=jax.ShapeDtypeStruct((T, B, H_pad), x_seq.dtype),
        grid_spec=pltpu.PrefetchScalarGridSpec(
            num_scalar_prefetch=0,
            grid=(num_chunks,),
            in_specs=[
                pl.BlockSpec((t_chunk, B, d_in), lambda c: (c, 0, 0)),  # x chunk
                pl.BlockSpec((B, H_pad), lambda c: (0, 0)),             # h0
                pl.BlockSpec((d_in, H_pad), lambda c: (0, 0)),          # Wx
                pl.BlockSpec((H_pad, H_pad), lambda c: (0, 0)),         # Wh
                pl.BlockSpec((1, H_pad), lambda c: (0, 0)),             # b
            ],
            out_specs=pl.BlockSpec((t_chunk, B, H_pad), lambda c: (c, 0, 0)),
            scratch_shapes=[pltpu.VMEM((B, H_pad), jnp.float32)],       # h carry
        ),
        # Recurrence: the chunk axis must stay sequential ("arbitrary").
        compiler_params=pltpu.CompilerParams(
            dimension_semantics=("arbitrary",),
        ),
    )(x_seq, h0_p, wx_p, wh_p, b_p)
    return out[..., :H]


if __name__ == "__main__":
    # Shapes consistent with the module: batch=8, input_dim=32, hidden=32,
    # sequence length 16 for the fused recurrence.
    B, D_IN, H, T = 8, 32, 32, 16

    key = jax.random.PRNGKey(0)
    k_x, k_h, k_w, k_b, k_seq = jax.random.split(key, 5)

    x = jax.random.normal(k_x, (B, D_IN), dtype=jnp.float32)
    prev_hidden = jax.random.normal(k_h, (B, H), dtype=jnp.float32)
    x_seq = jax.random.normal(k_seq, (T, B, D_IN), dtype=jnp.float32)

    # nn.Linear(input_dim+hidden_dim, hidden_dim) init: weight [H, D_IN+H], bias [H].
    fan_in = D_IN + H
    bound = 1.0 / jnp.sqrt(jnp.float32(fan_in))
    w = jax.random.uniform(k_w, (H, D_IN + H), dtype=jnp.float32,
                           minval=-bound, maxval=bound)
    b = jax.random.uniform(k_b, (H,), dtype=jnp.float32,
                           minval=-bound, maxval=bound)

    # One-time parameter prep (split + transpose + lane padding).
    wx_p, wh_p, b_p = prepare_params(w, b, D_IN)

    # --- single-step kernel (exact RNNLayer.forward) ---
    out_step = jax.block_until_ready(
        rnn_layer_forward(x, prev_hidden, wx_p, wh_p, b_p))
    ref_step = jnp.tanh(jnp.concatenate([x, prev_hidden], axis=1) @ w.T + b)
    assert out_step.shape == (B, H)
    assert jnp.allclose(out_step, ref_step, atol=1e-5, rtol=1e-5), \
        "single-step mismatch vs reference"

    # --- fused-sequence kernel (forward applied over T steps) ---
    out_seq = jax.block_until_ready(
        rnn_sequence_forward(x_seq, prev_hidden, wx_p, wh_p, b_p))

    def ref_scan(xs, h0):
        def step(h, xt):
            h_new = jnp.tanh(jnp.concatenate([xt, h], axis=1) @ w.T + b)
            return h_new, h_new
        _, hs = jax.lax.scan(step, h0, xs)
        return hs

    ref_seq = ref_scan(x_seq, prev_hidden)
    assert out_seq.shape == (T, B, H)
    assert jnp.allclose(out_seq, ref_seq, atol=1e-5, rtol=1e-5), \
        "fused-sequence mismatch vs reference"

    print("KERNEL_OK")
</pallas_src>

<mosaic_0001>
module attributes {stable_mosaic.version = 11 : i64} {
  func.func @rnn_step_kernel(%arg0: memref<8x32xf32, #tpu.memory_space<vmem>>, %arg1: memref<8x32xf32, #tpu.memory_space<vmem>>, %arg2: memref<32x128xf32, #tpu.memory_space<vmem>>, %arg3: memref<128x128xf32, #tpu.memory_space<vmem>>, %arg4: memref<1x128xf32, #tpu.memory_space<vmem>>, %arg5: memref<8x128xf32, #tpu.memory_space<vmem>>) attributes {dimension_semantics = [], scalar_prefetch = 0 : i64, scratch_operands = 0 : i64, tpu.core_type = #tpu.core_type<tc>} {
    %c0 = arith.constant 0 : index
    %c0_0 = arith.constant 0 : index
    %0 = vector.load %arg0[%c0, %c0_0] : memref<8x32xf32, #tpu.memory_space<vmem>>, vector<8x32xf32>
    %c0_1 = arith.constant 0 : index
    %c0_2 = arith.constant 0 : index
    %1 = vector.load %arg2[%c0_1, %c0_2] : memref<32x128xf32, #tpu.memory_space<vmem>>, vector<32x128xf32>
    %cst = arith.constant dense<0.000000e+00> : vector<8x128xf32>
    %2 = tpu.matmul %0, %1, %cst {dimension_numbers = #tpu.dot_dimension_numbers<[1], [0], [0], [1], [0, 0, 1, 1], [], []>} : vector<8x32xf32>, vector<32x128xf32>, vector<8x128xf32> -> vector<8x128xf32>
    %c0_3 = arith.constant 0 : index
    %c0_4 = arith.constant 0 : index
    %3 = vector.load %arg1[%c0_3, %c0_4] : memref<8x32xf32, #tpu.memory_space<vmem>>, vector<8x32xf32>
    %c0_5 = arith.constant 0 : index
    %c0_6 = arith.constant 0 : index
    %4 = vector.load %arg3[%c0_5, %c0_6] : memref<128x128xf32, #tpu.memory_space<vmem>>, vector<32x128xf32>
    %cst_7 = arith.constant dense<0.000000e+00> : vector<8x128xf32>
    %5 = tpu.matmul %3, %4, %cst_7 {dimension_numbers = #tpu.dot_dimension_numbers<[1], [0], [0], [1], [0, 0, 1, 1], [], []>} : vector<8x32xf32>, vector<32x128xf32>, vector<8x128xf32> -> vector<8x128xf32>
    %6 = arith.addf %2, %5 : vector<8x128xf32>
    %c0_8 = arith.constant 0 : index
    %c0_9 = arith.constant 0 : index
    %7 = vector.load %arg4[%c0_8, %c0_9] : memref<1x128xf32, #tpu.memory_space<vmem>>, vector<1x128xf32>
    %8 = vector.broadcast %7 : vector<1x128xf32> to vector<8x128xf32>
    %9 = arith.addf %6, %8 : vector<8x128xf32>
    %10 = math.tanh %9 : vector<8x128xf32>
    %c0_10 = arith.constant 0 : index
    %c0_11 = arith.constant 0 : index
    %11 = vector.load %arg5[%c0_10, %c0_11] : memref<8x128xf32, #tpu.memory_space<vmem>>, vector<8x128xf32>
    tpu.vector_store %arg5[%c0_10, %c0_11], %10 {strides = array<i32>} : memref<8x128xf32, #tpu.memory_space<vmem>>, vector<8x128xf32>,
    return
  }
}

</mosaic_0001>

<llo_original>
// kernel: tpu_custom_call.1
$region0: #{tpu_custom_call.1}
  #allocation0 [shape = 'u32[]', space=smem, size = 0x4, offset = 0x4, fixed_abs, tag = 'smem constant byte address 0x4 - core index']
  #allocation1 [shape = 'u32[144,128]{1,0:T(1,128)}', space=vmem, size = 0x12000, scoped, tag = 'internal scratch']
  %s0 = inlined_call_operand.hbm [shape: f32[8,32], index: 0, kind: input, shape index: {}]
  %s1 = inlined_call_operand.hbm [shape: f32[8,32], index: 1, kind: input, shape index: {}]
  %s2 = inlined_call_operand.hbm [shape: f32[32,128], index: 2, kind: input, shape index: {}]
  %s3 = inlined_call_operand.hbm [shape: f32[128,128], index: 3, kind: input, shape index: {}]
  %s4 = inlined_call_operand.vmem [shape: f32[1,128], index: 4, kind: input, shape index: {}]
  %s5 = inlined_call_operand.hbm [shape: f32[8,128], index: 5, kind: output, shape index: {}]
  %s6 = sld [smem:[#allocation0]]
  $region46: #{tpu_custom_call.1} parent=0
    _
  %s8 = ssub.s32 1, %s6
  %s9 = scalar_select 0, %s8, %s6
  $region1: #{tpu_custom_call.1} parent=0
    #allocation2 [shape = 'u8[4096]{0}', space=vmem, size = 0x1000, scoped, tag = 'input window, operand 0, single buffered']
    #allocation3 [shape = 's32[1]{0}', space=sflag, size = 0x4, scoped, tag = 'scoped memory for tpu_custom_call.1']
    #allocation4 [shape = 's32[1]{0}', space=sflag, size = 0x4, scoped, tag = 'scoped memory for tpu_custom_call.1']
    #allocation5 [shape = 'u8[4096]{0}', space=vmem, size = 0x1000, scoped, tag = 'input window, operand 1, single buffered']
    #allocation6 [shape = 's32[1]{0}', space=sflag, size = 0x4, scoped, tag = 'scoped memory for tpu_custom_call.1']
    #allocation7 [shape = 'u8[16384]{0}', space=vmem, size = 0x4000, scoped, tag = 'input window, operand 2, single buffered']
    #allocation8 [shape = 'u8[65536]{0}', space=vmem, size = 0x10000, scoped, tag = 'input window, operand 3, single buffered']
    #allocation9 [shape = 's32[1]{0}', space=sflag, size = 0x4, scoped, tag = 'scoped memory for tpu_custom_call.1']
    #allocation10 [shape = 'u8[4096]{0}', space=vmem, size = 0x1000, scoped, tag = 'output window, operand 0, single buffered']
    %10 = vsyncpa [#allocation3], 0
    %11 = vsyncpa [#allocation6], 0
    %12 = vsyncpa [#allocation9], 0
    %13 = vsyncpa [#allocation4], 0
    // Predicated region
    $region2: #{tpu_custom_call.1} parent=1 // pred_check
      _
    $region3: #{tpu_custom_call.1} parent=1 // pred_check_branch
      %15 = sbr.rel (0) target = $region5
    $region4: #{tpu_custom_call.1} parent=1 // pred_region
      %s17 = ssub.s32 128, 128
      %18 = vsyncadd [#allocation3], %s17
      %s20 = sshll.u32 [#allocation2], 4
      %s21 = int_to_ptr.vmem [resolvable:$true] %s20
      %23 = dma.hbm_to_vmem [thread:$0]  %s0, 128, %s21, [#allocation3]
    $region5: #{tpu_custom_call.1} parent=1 // pred_fallthru
      _
    // Predicated region
    $region6: #{tpu_custom_call.1} parent=1 // pred_check
      _
    $region7: #{tpu_custom_call.1} parent=1 // pred_check_branch
      %25 = sbr.rel (0) target = $region9
    $region8: #{tpu_custom_call.1} parent=1 // pred_region
      %s27 = ssub.s32 128, 128
      %28 = vsyncadd [#allocation6], %s27
      %s30 = sshll.u32 [#allocation5], 4
      %s31 = int_to_ptr.vmem [resolvable:$true] %s30
      %33 = dma.hbm_to_vmem [thread:$0]  %s1, 128, %s31, [#allocation6]
    $region9: #{tpu_custom_call.1} parent=1 // pred_fallthru
      _
    // Predicated region
    $region10: #{tpu_custom_call.1} parent=1 // pred_check
      _
    $region11: #{tpu_custom_call.1} parent=1 // pred_check_branch
      %35 = sbr.rel (0) target = $region13
    $region12: #{tpu_custom_call.1} parent=1 // pred_region
      %s37 = ssub.s32 512, 512
      %38 = vsyncadd [#allocation6], %s37
      %s39 = sshll.u32 [#allocation7], 4
      %s40 = int_to_ptr.vmem [resolvable:$true] %s39
      %45 = dma.hbm_to_vmem [thread:$0]  %s2, 512, %s40, [#allocation6], 128, 128, 8
    $region13: #{tpu_custom_call.1} parent=1 // pred_fallthru
      _
    // Predicated region
    $region14: #{tpu_custom_call.1} parent=1 // pred_check
      _
    $region15: #{tpu_custom_call.1} parent=1 // pred_check_branch
      %47 = sbr.rel (0) target = $region17
    $region16: #{tpu_custom_call.1} parent=1 // pred_region
      %s49 = ssub.s32 2048, 2048
      %50 = vsyncadd [#allocation9], %s49
      %s51 = sshll.u32 [#allocation8], 4
      %s52 = int_to_ptr.vmem [resolvable:$true] %s51
      %57 = dma.hbm_to_vmem [thread:$0]  %s3, 2048, %s52, [#allocation9], 128, 128, 8
    $region17: #{tpu_custom_call.1} parent=1 // pred_fallthru
      _
    // Predicated region
    $region18: #{tpu_custom_call.1} parent=1 // pred_check
      _
    $region19: #{tpu_custom_call.1} parent=1 // pred_check_branch
      %59 = sbr.rel (0) target = $region21
    $region20: #{tpu_custom_call.1} parent=1 // pred_region
      _
    $region21: #{tpu_custom_call.1} parent=1 // pred_fallthru
      _
    // Predicated region
    $region22: #{tpu_custom_call.1} parent=1 // pred_check
      _
    $region23: #{tpu_custom_call.1} parent=1 // pred_check_branch
      %61 = sbr.rel (0) target = $region25
    $region24: #{tpu_custom_call.1} parent=1 // pred_region
      %62 = dma.done [#allocation3], 128
    $region25: #{tpu_custom_call.1} parent=1 // pred_fallthru
      _
    // Predicated region
    $region26: #{tpu_custom_call.1} parent=1 // pred_check
      _
    $region27: #{tpu_custom_call.1} parent=1 // pred_check_branch
      %64 = sbr.rel (0) target = $region29
    $region28: #{tpu_custom_call.1} parent=1 // pred_region
      %65 = dma.done [#allocation6], 128
    $region29: #{tpu_custom_call.1} parent=1 // pred_fallthru
      _
    // Predicated region
    $region30: #{tpu_custom_call.1} parent=1 // pred_check
      _
    $region31: #{tpu_custom_call.1} parent=1 // pred_check_branch
      %67 = sbr.rel (0) target = $region33
    $region32: #{tpu_custom_call.1} parent=1 // pred_region
      %68 = dma.done [#allocation6], 512
    $region33: #{tpu_custom_call.1} parent=1 // pred_fallthru
      _
    // Predicated region
    $region34: #{tpu_custom_call.1} parent=1 // pred_check
      _
    $region35: #{tpu_custom_call.1} parent=1 // pred_check_branch
      %70 = sbr.rel (0) target = $region37
    $region36: #{tpu_custom_call.1} parent=1 // pred_region
      %71 = dma.done [#allocation9], 2048
    $region37: #{tpu_custom_call.1} parent=1 // pred_fallthru
      _
    %v72 = vld [vmem:[#allocation2] sm:$0xff]
    %v73 = vld [vmem:[#allocation7] sm:$0xff]
    %v74 = vld [vmem:[#allocation7 + $0x8] sm:$0xff]
    %v75 = vld [vmem:[#allocation7 + $0x10] sm:$0xff]
    %v76 = vld [vmem:[#allocation7 + $0x18] sm:$0xff]
    %v77 = vld [vmem:[#allocation5] sm:$0xff]
    %v78 = vld [vmem:[#allocation8] sm:$0xff]
    %v79 = vld [vmem:[#allocation8 + $0x8] sm:$0xff]
    %v80 = vld [vmem:[#allocation8 + $0x10] sm:$0xff]
    %v81 = vld [vmem:[#allocation8 + $0x18] sm:$0xff]
    %vm82 = vcmask 261120
    %v84 = vsel %vm82, %v77, 0
    %86 = vmatprep.subr.mxu0 0.0
    %87 = vmatpush1.msra.mxu0 %v78
    %88 = vmatprep.subr.mxu0 0.0
    %89 = vmatpush1.msra.mxu0 %v79
    %90 = vmatprep.subr.mxu0 0.0
    %91 = vmatpush1.msra.mxu0 %v80
    %92 = vmatprep.subr.mxu0 0.0
    %93 = vmatpush1.msra.mxu0 %v81
    %94 = vmatprep.subr.mxu0 0.0
    %95 = vmatpush1.msra.mxu0 0.0
    %96 = vmatprep.subr.mxu0 0.0
    %97 = vmatpush1.msra.mxu0 0.0
    %98 = vmatprep.subr.mxu0 0.0
    %99 = vmatpush1.msra.mxu0 0.0
    %100 = vmatprep.subr.mxu0 0.0
    %101 = vmatpush1.msra.mxu0 0.0
    %102 = vmatprep.subr.mxu0 0.0
    %103 = vmatpush1.msra.mxu0 0.0
    %104 = vmatprep.subr.mxu0 0.0
    %105 = vmatpush1.msra.mxu0 0.0
    %106 = vmatprep.subr.mxu0 0.0
    %107 = vmatpush1.msra.mxu0 0.0
    %108 = vmatprep.subr.mxu0 0.0
    %109 = vmatpush1.msra.mxu0 0.0
    %110 = vmatprep.subr.mxu0 0.0
    %111 = vmatpush1.msra.mxu0 0.0
    %112 = vmatprep.subr.mxu0 0.0
    %113 = vmatpush1.msra.mxu0 0.0
    %114 = vmatprep.subr.mxu0 0.0
    %115 = vmatpush1.msra.mxu0 0.0
    %116 = vmatprep.subr.mxu0 0.0
    %117 = vmatpush1.msra.mxu0 0.0
    %118 = vmatprep.subr.mxu0 0.0
    %119 = vmatpush1.msra.mxu0 0.0
    %120 = vmatprep.subr.mxu0 0.0
    %121 = vmatpush1.msra.mxu0 0.0
    %122 = vmatprep.subr.mxu0 0.0
    %123 = vmatpush1.msra.mxu0 0.0
    %124 = vmatprep.subr.mxu0 0.0
    %125 = vmatpush1.msra.mxu0 0.0
    %126 = vmatprep.subr.mxu0 0.0
    %127 = vmatpush1.msra.mxu0 0.0
    %128 = vmatprep.subr.mxu0 0.0
    %129 = vmatpush1.msra.mxu0 0.0
    %130 = vmatprep.subr.mxu0 0.0
    %131 = vmatpush1.msra.mxu0 0.0
    %132 = vmatprep.subr.mxu0 0.0
    %133 = vmatpush1.msra.mxu0 0.0
    %134 = vmatprep.subr.mxu0 0.0
    %135 = vmatpush1.msra.mxu0 0.0
    %136 = vmatprep.subr.mxu0 0.0
    %137 = vmatpush1.msra.mxu0 0.0
    %138 = vmatprep.subr.mxu0 0.0
    %139 = vmatpush1.msra.mxu0 0.0
    %140 = vmatprep.subr.mxu0 0.0
    %141 = vmatpush1.msra.mxu0 0.0
    %142 = vmatprep.subr.mxu0 0.0
    %143 = vmatpush1.msra.mxu0 0.0
    %144 = vmatprep.subr.mxu0 0.0
    %145 = vmatpush1.msra.mxu0 0.0
    %146 = vmatprep.subr.mxu0 0.0
    %147 = vmatpush1.msra.mxu0 0.0
    %148 = vmatprep.subr.mxu0 0.0
    %149 = vmatpush1.msra.mxu0 0.0
    %150 = vmatprep.mubr.f32.mxu0 0.0
    %151 = vmatmul.mubr.f32.gmra.mrb[0].mxu0 %v84
    %v152 = vpop.f32.mrb[0].mxu0
    %v153 = vadd.f32 0.0, %v152
    %v154 = vpop.f32.mrb[0].mxu0
    %155 = vdwg.mxu0
    %v157 = vsel %vm82, %v72, 0
    %159 = vmatprep.subr.mxu0 0.0
    %160 = vmatpush1.msra.mxu0 %v73
    %161 = vmatprep.subr.mxu0 0.0
    %162 = vmatpush1.msra.mxu0 %v74
    %163 = vmatprep.subr.mxu0 0.0
    %164 = vmatpush1.msra.mxu0 %v75
    %165 = vmatprep.subr.mxu0 0.0
    %166 = vmatpush1.msra.mxu0 %v76
    %167 = vmatprep.subr.mxu0 0.0
    %168 = vmatpush1.msra.mxu0 0.0
    %169 = vmatprep.subr.mxu0 0.0
    %170 = vmatpush1.msra.mxu0 0.0
    %171 = vmatprep.subr.mxu0 0.0
    %172 = vmatpush1.msra.mxu0 0.0
    %173 = vmatprep.subr.mxu0 0.0
    %174 = vmatpush1.msra.mxu0 0.0
    %175 = vmatprep.subr.mxu0 0.0
    %176 = vmatpush1.msra.mxu0 0.0
    %177 = vmatprep.subr.mxu0 0.0
    %178 = vmatpush1.msra.mxu0 0.0
    %179 = vmatprep.subr.mxu0 0.0
    %180 = vmatpush1.msra.mxu0 0.0
    %181 = vmatprep.subr.mxu0 0.0
    %182 = vmatpush1.msra.mxu0 0.0
    %183 = vmatprep.subr.mxu0 0.0
    %184 = vmatpush1.msra.mxu0 0.0
    %185 = vmatprep.subr.mxu0 0.0
    %186 = vmatpush1.msra.mxu0 0.0
    %187 = vmatprep.subr.mxu0 0.0
    %188 = vmatpush1.msra.mxu0 0.0
    %189 = vmatprep.subr.mxu0 0.0
    %190 = vmatpush1.msra.mxu0 0.0
    %191 = vmatprep.subr.mxu0 0.0
    %192 = vmatpush1.msra.mxu0 0.0
    %193 = vmatprep.subr.mxu0 0.0
    %194 = vmatpush1.msra.mxu0 0.0
    %195 = vmatprep.subr.mxu0 0.0
    %196 = vmatpush1.msra.mxu0 0.0
    %197 = vmatprep.subr.mxu0 0.0
    %198 = vmatpush1.msra.mxu0 0.0
    %199 = vmatprep.subr.mxu0 0.0
    %200 = vmatpush1.msra.mxu0 0.0
    %201 = vmatprep.subr.mxu0 0.0
    %202 = vmatpush1.msra.mxu0 0.0
    %203 = vmatprep.subr.mxu0 0.0
    %204 = vmatpush1.msra.mxu0 0.0
    %205 = vmatprep.subr.mxu0 0.0
    %206 = vmatpush1.msra.mxu0 0.0
    %207 = vmatprep.subr.mxu0 0.0
    %208 = vmatpush1.msra.mxu0 0.0
    %209 = vmatprep.subr.mxu0 0.0
    %210 = vmatpush1.msra.mxu0 0.0
    %211 = vmatprep.subr.mxu0 0.0
    %212 = vmatpush1.msra.mxu0 0.0
    %213 = vmatprep.subr.mxu0 0.0
    %214 = vmatpush1.msra.mxu0 0.0
    %215 = vmatprep.subr.mxu0 0.0
    %216 = vmatpush1.msra.mxu0 0.0
    %217 = vmatprep.subr.mxu0 0.0
    %218 = vmatpush1.msra.mxu0 0.0
    %219 = vmatprep.subr.mxu0 0.0
    %220 = vmatpush1.msra.mxu0 0.0
    %221 = vmatprep.subr.mxu0 0.0
    %222 = vmatpush1.msra.mxu0 0.0
    %223 = vmatprep.mubr.f32.mxu0 0.0
    %224 = vmatmul.mubr.f32.gmra.mrb[0].mxu0 %v157
    %v225 = vpop.f32.mrb[0].mxu0
    %v226 = vadd.f32 %v153, %v225
    %v227 = vpop.f32.mrb[0].mxu0
    %228 = vdwg.mxu0
    %v229 = vld [vmem:[%s4] sm:$0x1]
    %v231 = vlaneseq
    %v232 = vshrl.u32 %v231, 7
    %v233 = vsub.s32 0, %v232
    %v234 = vrot.slane %v229, %v233
    %v236 = vadd.f32 %v226, %v234
    %v237 = vtanh.pop %v236
    %238 = vst [vmem:[#allocation10] sm:$0xff] %v237
    // Predicated region
    $region38: #{tpu_custom_call.1} parent=1 // pred_check
      _
    $region39: #{tpu_custom_call.1} parent=1 // pred_check_branch
      %240 = sbr.rel (0) target = $region41
    $region40: #{tpu_custom_call.1} parent=1 // pred_region
      %s242 = ssub.s32 128, 128
      %243 = vsyncadd [#allocation4], %s242
      %s245 = sshll.u32 [#allocation10], 4
      %s246 = int_to_ptr.vmem [resolvable:$true] %s245
      %248 = dma.vmem_to_hbm [thread:$0]  %s246, 128, %s5, [#allocation4]
    $region41: #{tpu_custom_call.1} parent=1 // pred_fallthru
      _
    // Predicated region
    $region42: #{tpu_custom_call.1} parent=1 // pred_check
      _
    $region43: #{tpu_custom_call.1} parent=1 // pred_check_branch
      %250 = sbr.rel (0) target = $region45
    $region44: #{tpu_custom_call.1} parent=1 // pred_region
      %251 = dma.done [#allocation4], 128
    $region45: #{tpu_custom_call.1} parent=1 // pred_fallthru
      _
    %252 = vsyncpa [#allocation3], 1
    %253 = vsyncpa [#allocation6], 1
    %254 = vsyncpa [#allocation9], 1
    %255 = vsyncpa [#allocation4], 1

</llo_original>
